<compile_context>
chip_gen: v5e
topology: v5e:2x2
jax: 0.10.0
libtpu: 0.0.40
codegen_flags: <defaults>
</compile_context>

<pallas_src>
import jax
import jax.numpy as jnp
from jax.experimental import pallas as pl
from jax.experimental.pallas import tpu as pltpu

B = 8            # batch
D = 128          # inputDim
HEADS = 8        # num_heads (does not change the seq-len-1 result)
BIT = 32         # outputDim
OUT = 2 * BIT    # fc2 output width (= 64)
OUT_PAD = 128    # lane-dense padded fc2 width (upper 64 lanes = pair-swapped copy)
NW = D + OUT_PAD # fused weight width (= 256)
EPS = 1e-5       # nn.LayerNorm default

HI = jax.lax.Precision.HIGHEST  # wrapper-side weight fusion / reference matmuls


# --------------------------------------------------------------------------- #
# Kernel
# --------------------------------------------------------------------------- #
def modality_hash_kernel(x_ref, w_ref, ba_ref, c2_ref, cs_ref, bf_ref, out_ref):
    x = x_ref[...]                                                    # (tb, D)

    # Single MXU matmul: [attention | attention@fc2] fused weight (128 x 256).
    y = jnp.dot(x, w_ref[...], preferred_element_type=jnp.float32)   # (tb, 256)

    # LayerNorm statistics on the attention half (fp32, biased variance,
    # single-pass E[a^2] - mu^2 so both reductions depend only on `a`).
    a = y[:, :D] + ba_ref[...]                                        # (tb, 128)
    mu = jnp.mean(a, axis=-1, keepdims=True)
    var = jnp.mean(a * a, axis=-1, keepdims=True) - mu * mu
    var = jnp.maximum(var, 0.0)
    r = jax.lax.rsqrt(var + EPS)                                      # (tb, 1)

    # fc2 (+ folded LayerNorm affine) applied as per-row scale/shift, then relu.
    g = y[:, D:]                                                      # (tb, 128)
    h = r * (g + c2_ref[...] - mu * cs_ref[...]) + bf_ref[...]
    h = jnp.maximum(h, 0.0)

    # Pairwise softmax over adjacent fc2 columns (2k, 2k+1):
    #   out[j] = softmax([h[j], h[j^1]])[0] = sigmoid(h[j] - h[j^1]).
    # Lane 64+j of h holds exactly h[j^1] (pair-swapped weight columns), so the
    # partner is a single 64-lane XLU rotation: roll(h, 64)[j] = h[64+j].
    partner = pltpu.roll(h, OUT, axis=1)
    out = jax.nn.sigmoid(h - partner)                                 # (tb, 128)

    # Lanes 0..63 hold all 64 outputs in order; store them directly.
    out_ref[...] = out[:, :OUT]


# --------------------------------------------------------------------------- #
# One-off parameter fusion (hoisted out of the per-call path)
# --------------------------------------------------------------------------- #
def fuse_params(p):
    """Precompute the fused tensors consumed by the kernel. Call once per
    parameter set; the result is reused across every forward call."""
    # seq_len==1 attention: only the V projection and out_proj matter.
    wv = p["in_proj_w"][2 * D:3 * D, :]                        # (D, D)
    bv = p["in_proj_b"][2 * D:3 * D]                           # (D,)
    wo = p["out_proj_w"]                                       # (D, D)
    bo = p["out_proj_b"]                                       # (D,)
    w_attn = jnp.dot(wv.T, wo.T, precision=HI)                 # (D, D)
    b_attn = jnp.dot(bv, wo.T, precision=HI) + bo              # (D,)

    # LayerNorm affine folded into fc2: n@Wf^T + bf == z@(gamma*Wf^T) + (beta@Wf^T + bf)
    wf = p["gamma"][:, None] * p["fc2_w"].T                    # (D, OUT)
    bf = jnp.dot(p["beta"], p["fc2_w"].T, precision=HI) + p["fc2_b"]   # (OUT,)

    # Fuse attention into fc2 so the kernel needs a single matmul:
    #   a@Wf = x@(W_attn@Wf) + b_attn@Wf ;  (a-mu)@Wf = a@Wf - mu*colsum(Wf)
    w2 = jnp.dot(w_attn, wf, precision=HI)                     # (D, OUT)
    c2 = jnp.dot(b_attn, wf, precision=HI)                     # (OUT,)
    cs = jnp.sum(wf, axis=0)                                   # (OUT,)

    # Pad fc2 columns to 128 lanes: lanes 64..127 carry the pair-swapped copy
    # (lane 64+j == original column j XOR 1) so the kernel's partner fetch is a
    # single roll and the kernel output needs no reordering.
    swap = jnp.arange(OUT) ^ 1

    def pair_pad(v):  # (..., OUT) -> (..., OUT_PAD)
        return jnp.concatenate([v, v[..., swap]], axis=-1)

    w_cat = jnp.concatenate([w_attn, pair_pad(w2)], axis=1)    # (D, 256)
    return {
        "w_cat": w_cat.astype(jnp.float32),
        "b_attn": b_attn[None, :].astype(jnp.float32),         # (1, D)
        "c2": pair_pad(c2)[None, :].astype(jnp.float32),       # (1, OUT_PAD)
        "cs": pair_pad(cs)[None, :].astype(jnp.float32),       # (1, OUT_PAD)
        "bf": pair_pad(bf)[None, :].astype(jnp.float32),       # (1, OUT_PAD)
    }


# --------------------------------------------------------------------------- #
# Wrapper
# --------------------------------------------------------------------------- #
def _pick_batch_tile(Bv):
    # Small batch: one grid step (latency bound, nothing to shard).
    if Bv <= 512:
        return Bv
    # Production batch: large tiles for HBM roofline, but keep >= 2 grid steps
    # so the "parallel" batch axis shards across v7x's two TensorCores.
    for tb in (2048, 1024, 512, 256, 128, 64, 32, 16, 8):
        if Bv % tb == 0 and Bv // tb >= 2:
            return tb
    # TODO(synk): pad + row-mask for huge batches not divisible by 8.
    return Bv


def modality_hash(data, fused):
    Bv, Dv = data.shape
    assert Dv == D
    tb = _pick_batch_tile(Bv)
    assert Bv % tb == 0, "batch must tile evenly"
    grid = (Bv // tb,)

    cost = pl.CostEstimate(
        flops=int(2 * Bv * D * NW + 16 * Bv * OUT_PAD),
        transcendentals=int(Bv * OUT_PAD + Bv),
        bytes_accessed=int(4 * (Bv * D + D * NW + D + 3 * OUT_PAD + Bv * OUT)),
    )

    return pl.pallas_call(
        modality_hash_kernel,
        out_shape=jax.ShapeDtypeStruct((Bv, OUT), jnp.float32),
        grid=grid,
        in_specs=[
            pl.BlockSpec((tb, D), lambda i: (i, 0)),            # activations (tiled)
            pl.BlockSpec((D, NW), lambda i: (0, 0)),            # fused [attn | attn@fc2] weight
            pl.BlockSpec((1, D), lambda i: (0, 0)),             # fused attention bias
            pl.BlockSpec((1, OUT_PAD), lambda i: (0, 0)),       # b_attn @ Wf
            pl.BlockSpec((1, OUT_PAD), lambda i: (0, 0)),       # colsum(Wf)
            pl.BlockSpec((1, OUT_PAD), lambda i: (0, 0)),       # fused fc2 bias
        ],
        out_specs=pl.BlockSpec((tb, OUT), lambda i: (i, 0)),
        compiler_params=pltpu.CompilerParams(
            dimension_semantics=("parallel",)),
        cost_estimate=cost,
    )(data, fused["w_cat"], fused["b_attn"], fused["c2"], fused["cs"], fused["bf"])


# --------------------------------------------------------------------------- #
# Synthetic parameters + pure-JAX reference
# --------------------------------------------------------------------------- #
def make_params(key):
    """Deterministic synthetic parameters matching the module's shapes."""
    ks = jax.random.split(key, 8)
    s = 0.05
    return {
        # nn.MultiheadAttention(D, HEADS) packed in_proj ([q; k; v]) + out_proj
        "in_proj_w": jax.random.normal(ks[0], (3 * D, D), jnp.float32) * s,
        "in_proj_b": jax.random.normal(ks[1], (3 * D,), jnp.float32) * s,
        "out_proj_w": jax.random.normal(ks[2], (D, D), jnp.float32) * s,
        "out_proj_b": jax.random.normal(ks[3], (D,), jnp.float32) * s,
        # LayerNorm(D) — non-trivial affine so the gamma/beta fold is exercised
        "gamma": 1.0 + 0.1 * jax.random.normal(ks[4], (D,), jnp.float32),
        "beta": 0.05 * jax.random.normal(ks[5], (D,), jnp.float32),
        # nn.Linear(D, 2*BIT)
        "fc2_w": jax.random.normal(ks[6], (OUT, D), jnp.float32) * s,
        "fc2_b": jax.random.normal(ks[7], (OUT,), jnp.float32) * s,
    }


def modality_hash_ref(data, p):
    """Pure-JAX reference mirroring the PyTorch forward (unfused)."""
    wv = p["in_proj_w"][2 * D:3 * D, :]
    bv = p["in_proj_b"][2 * D:3 * D]
    v = jnp.dot(data, wv.T, precision=HI) + bv
    a = jnp.dot(v, p["out_proj_w"].T, precision=HI) + p["out_proj_b"]
    mu = jnp.mean(a, axis=-1, keepdims=True)
    var = jnp.mean((a - mu) ** 2, axis=-1, keepdims=True)
    n = (a - mu) / jnp.sqrt(var + EPS) * p["gamma"] + p["beta"]
    h = jnp.maximum(jnp.dot(n, p["fc2_w"].T, precision=HI) + p["fc2_b"], 0.0)
    h3 = h.reshape(data.shape[0], BIT, 2)
    return jax.nn.softmax(h3, axis=-1).reshape(data.shape[0], OUT)


if __name__ == "__main__":
    key = jax.random.PRNGKey(0)
    kx, kp = jax.random.split(key)
    data = jax.random.normal(kx, (B, D), jnp.float32)   # (batch, inputDim)
    params = make_params(kp)

    fused = jax.tree_util.tree_map(jax.block_until_ready, fuse_params(params))

    out = jax.block_until_ready(modality_hash(data, fused))

    ref = modality_hash_ref(data, params)
    assert out.shape == (B, OUT)
    assert jnp.allclose(out, ref, rtol=1e-5, atol=1e-5), "mismatch vs reference"
    print("KERNEL_OK")
</pallas_src>

<mosaic_0001>
module attributes {stable_mosaic.version = 11 : i64} {
  func.func @modality_hash_kernel(%arg0: i32, %arg1: memref<8x128xf32, #tpu.memory_space<vmem>>, %arg2: memref<128x256xf32, #tpu.memory_space<vmem>>, %arg3: memref<1x128xf32, #tpu.memory_space<vmem>>, %arg4: memref<1x128xf32, #tpu.memory_space<vmem>>, %arg5: memref<1x128xf32, #tpu.memory_space<vmem>>, %arg6: memref<1x128xf32, #tpu.memory_space<vmem>>, %arg7: memref<8x64xf32, #tpu.memory_space<vmem>>) attributes {dimension_semantics = [#tpu.dimension_semantics<parallel>], iteration_bounds = array<i64: 1>, scalar_prefetch = 0 : i64, scratch_operands = 0 : i64, tpu.core_type = #tpu.core_type<tc>, window_params = [{transform_indices = @transform_0, window_bounds = array<i64: 8, 128>}, {pipeline_mode = #tpu.pipeline_mode<synchronous>, transform_indices = @transform_1, window_bounds = array<i64: 128, 256>}, {pipeline_mode = #tpu.pipeline_mode<synchronous>, transform_indices = @transform_2, window_bounds = array<i64: 1, 128>}, {pipeline_mode = #tpu.pipeline_mode<synchronous>, transform_indices = @transform_3, window_bounds = array<i64: 1, 128>}, {pipeline_mode = #tpu.pipeline_mode<synchronous>, transform_indices = @transform_4, window_bounds = array<i64: 1, 128>}, {pipeline_mode = #tpu.pipeline_mode<synchronous>, transform_indices = @transform_5, window_bounds = array<i64: 1, 128>}, {transform_indices = @transform_6, window_bounds = array<i64: 8, 64>}]} {
    %c0 = arith.constant 0 : index
    %c0_0 = arith.constant 0 : index
    %0 = vector.load %arg1[%c0, %c0_0] : memref<8x128xf32, #tpu.memory_space<vmem>>, vector<8x128xf32>
    %c0_1 = arith.constant 0 : index
    %c0_2 = arith.constant 0 : index
    %1 = vector.load %arg2[%c0_1, %c0_2] : memref<128x256xf32, #tpu.memory_space<vmem>>, vector<128x256xf32>
    %cst = arith.constant dense<0.000000e+00> : vector<8x256xf32>
    %2 = tpu.matmul %0, %1, %cst {dimension_numbers = #tpu.dot_dimension_numbers<[1], [0], [0], [1], [0, 0, 1, 1], [], []>} : vector<8x128xf32>, vector<128x256xf32>, vector<8x256xf32> -> vector<8x256xf32>
    %3 = vector.extract_strided_slice %2 {offsets = [0, 0], sizes = [8, 128], strides = [1, 1]} : vector<8x256xf32> to vector<8x128xf32>
    %c0_3 = arith.constant 0 : index
    %c0_4 = arith.constant 0 : index
    %4 = vector.load %arg3[%c0_3, %c0_4] : memref<1x128xf32, #tpu.memory_space<vmem>>, vector<1x128xf32>
    %5 = vector.broadcast %4 : vector<1x128xf32> to vector<8x128xf32>
    %6 = arith.addf %3, %5 : vector<8x128xf32>
    %cst_5 = arith.constant dense<0.000000e+00> : vector<8xf32>
    %7 = vector.multi_reduction <add>, %6, %cst_5 [1] : vector<8x128xf32> to vector<8xf32>
    %8 = vector.shape_cast %7 : vector<8xf32> to vector<8x1xf32>
    %cst_6 = arith.constant 1.280000e+02 : f32
    %9 = vector.broadcast %cst_6 : f32 to vector<8x1xf32>
    %10 = arith.divf %8, %9 : vector<8x1xf32>
    %11 = arith.mulf %6, %6 : vector<8x128xf32>
    %cst_7 = arith.constant dense<0.000000e+00> : vector<8xf32>
    %12 = vector.multi_reduction <add>, %11, %cst_7 [1] : vector<8x128xf32> to vector<8xf32>
    %13 = vector.shape_cast %12 : vector<8xf32> to vector<8x1xf32>
    %cst_8 = arith.constant 1.280000e+02 : f32
    %14 = vector.broadcast %cst_8 : f32 to vector<8x1xf32>
    %15 = arith.divf %13, %14 : vector<8x1xf32>
    %16 = arith.mulf %10, %10 : vector<8x1xf32>
    %17 = arith.subf %15, %16 : vector<8x1xf32>
    %cst_9 = arith.constant 0.000000e+00 : f32
    %18 = vector.broadcast %cst_9 : f32 to vector<8x1xf32>
    %19 = arith.maximumf %17, %18 : vector<8x1xf32>
    %cst_10 = arith.constant 9.99999974E-6 : f32
    %20 = vector.broadcast %cst_10 : f32 to vector<8x1xf32>
    %21 = arith.addf %19, %20 : vector<8x1xf32>
    %22 = math.rsqrt %21 : vector<8x1xf32>
    %23 = vector.extract_strided_slice %2 {offsets = [0, 128], sizes = [8, 128], strides = [1, 1]} : vector<8x256xf32> to vector<8x128xf32>
    %c0_11 = arith.constant 0 : index
    %c0_12 = arith.constant 0 : index
    %24 = vector.load %arg4[%c0_11, %c0_12] : memref<1x128xf32, #tpu.memory_space<vmem>>, vector<1x128xf32>
    %25 = vector.broadcast %24 : vector<1x128xf32> to vector<8x128xf32>
    %26 = arith.addf %23, %25 : vector<8x128xf32>
    %c0_13 = arith.constant 0 : index
    %c0_14 = arith.constant 0 : index
    %27 = vector.load %arg5[%c0_13, %c0_14] : memref<1x128xf32, #tpu.memory_space<vmem>>, vector<1x128xf32>
    %28 = vector.broadcast %10 : vector<8x1xf32> to vector<8x128xf32>
    %29 = vector.broadcast %27 : vector<1x128xf32> to vector<8x128xf32>
    %30 = arith.mulf %28, %29 : vector<8x128xf32>
    %31 = arith.subf %26, %30 : vector<8x128xf32>
    %32 = vector.broadcast %22 : vector<8x1xf32> to vector<8x128xf32>
    %33 = arith.mulf %32, %31 : vector<8x128xf32>
    %c0_15 = arith.constant 0 : index
    %c0_16 = arith.constant 0 : index
    %34 = vector.load %arg6[%c0_15, %c0_16] : memref<1x128xf32, #tpu.memory_space<vmem>>, vector<1x128xf32>
    %35 = vector.broadcast %34 : vector<1x128xf32> to vector<8x128xf32>
    %36 = arith.addf %33, %35 : vector<8x128xf32>
    %cst_17 = arith.constant 0.000000e+00 : f32
    %37 = vector.broadcast %cst_17 : f32 to vector<8x128xf32>
    %38 = arith.maximumf %36, %37 : vector<8x128xf32>
    %c64_i32 = arith.constant 64 : i32
    %39 = tpu.dynamic_rotate %38 by %c64_i32 dim 1 : vector<8x128xf32>, i32 -> vector<8x128xf32>
    %40 = arith.subf %38, %39 : vector<8x128xf32>
    %41 = arith.negf %40 : vector<8x128xf32>
    %42 = math.exp %41 : vector<8x128xf32>
    %cst_18 = arith.constant 1.000000e+00 : f32
    %43 = vector.broadcast %cst_18 : f32 to vector<8x128xf32>
    %44 = arith.addf %43, %42 : vector<8x128xf32>
    %45 = arith.divf %43, %44 : vector<8x128xf32>
    %46 = vector.extract_strided_slice %45 {offsets = [0, 0], sizes = [8, 64], strides = [1, 1]} : vector<8x128xf32> to vector<8x64xf32>
    %c0_19 = arith.constant 0 : index
    %c0_20 = arith.constant 0 : index
    %47 = vector.load %arg7[%c0_19, %c0_20] : memref<8x64xf32, #tpu.memory_space<vmem>>, vector<8x64xf32>
    tpu.vector_store %arg7[%c0_19, %c0_20], %46 {strides = array<i32>} : memref<8x64xf32, #tpu.memory_space<vmem>>, vector<8x64xf32>,
    return
  }
  func.func @transform_0(%arg0: i32) -> (i32, i32) {
    %c0_i32 = arith.constant 0 : i32
    %c0_i32_0 = arith.constant 0 : i32
    return %arg0, %c0_i32 : i32, i32
  }
  func.func @transform_1(%arg0: i32) -> (i32, i32) {
    %c0_i32 = arith.constant 0 : i32
    %c0_i32_0 = arith.constant 0 : i32
    %c0_i32_1 = arith.constant 0 : i32
    return %c0_i32, %c0_i32_0 : i32, i32
  }
  func.func @transform_2(%arg0: i32) -> (i32, i32) {
    %c0_i32 = arith.constant 0 : i32
    %c0_i32_0 = arith.constant 0 : i32
    %c0_i32_1 = arith.constant 0 : i32
    return %c0_i32, %c0_i32_0 : i32, i32
  }
  func.func @transform_3(%arg0: i32) -> (i32, i32) {
    %c0_i32 = arith.constant 0 : i32
    %c0_i32_0 = arith.constant 0 : i32
    %c0_i32_1 = arith.constant 0 : i32
    return %c0_i32, %c0_i32_0 : i32, i32
  }
  func.func @transform_4(%arg0: i32) -> (i32, i32) {
    %c0_i32 = arith.constant 0 : i32
    %c0_i32_0 = arith.constant 0 : i32
    %c0_i32_1 = arith.constant 0 : i32
    return %c0_i32, %c0_i32_0 : i32, i32
  }
  func.func @transform_5(%arg0: i32) -> (i32, i32) {
    %c0_i32 = arith.constant 0 : i32
    %c0_i32_0 = arith.constant 0 : i32
    %c0_i32_1 = arith.constant 0 : i32
    return %c0_i32, %c0_i32_0 : i32, i32
  }
  func.func @transform_6(%arg0: i32) -> (i32, i32) {
    %c0_i32 = arith.constant 0 : i32
    %c0_i32_0 = arith.constant 0 : i32
    return %arg0, %c0_i32 : i32, i32
  }
}

</mosaic_0001>

<llo_original>
// kernel: tpu_custom_call.1
$region0: #{tpu_custom_call.1}
  #allocation0 [shape = 'u32[]', space=smem, size = 0x4, offset = 0x4, fixed_abs, tag = 'smem constant byte address 0x4 - core index']
  #allocation1 [shape = 'u32[72,128]{1,0:T(1,128)}', space=vmem, size = 0x9000, scoped, tag = 'internal scratch']
  %s0 = inlined_call_operand.hbm [shape: f32[8,128], index: 0, kind: input, shape index: {}]
  %s1 = inlined_call_operand.hbm [shape: f32[128,256], index: 1, kind: input, shape index: {}]
  %s2 = inlined_call_operand.vmem [shape: f32[1,128], index: 2, kind: input, shape index: {}]
  %s3 = inlined_call_operand.vmem [shape: f32[1,128], index: 3, kind: input, shape index: {}]
  %s4 = inlined_call_operand.vmem [shape: f32[1,128], index: 4, kind: input, shape index: {}]
  %s5 = inlined_call_operand.vmem [shape: f32[1,128], index: 5, kind: input, shape index: {}]
  %s6 = inlined_call_operand.hbm [shape: f32[8,64], index: 6, kind: output, shape index: {}]
  %s7 = sld [smem:[#allocation0]]
  $region42: #{tpu_custom_call.1} parent=0
    _
  %s9 = ssub.s32 1, %s7
  %s10 = scalar_select 0, %s9, %s7
  $region1: #{tpu_custom_call.1} parent=0
    #allocation2 [shape = 'u8[4096]{0}', space=vmem, size = 0x1000, scoped, tag = 'input window, operand 0, single buffered']
    #allocation3 [shape = 's32[1]{0}', space=sflag, size = 0x4, scoped, tag = 'scoped memory for tpu_custom_call.1']
    #allocation4 [shape = 's32[1]{0}', space=sflag, size = 0x4, scoped, tag = 'scoped memory for tpu_custom_call.1']
    #allocation5 [shape = 'u8[131072]{0}', space=vmem, size = 0x20000, scoped, tag = 'input window, operand 1, single buffered']
    #allocation6 [shape = 's32[1]{0}', space=sflag, size = 0x4, scoped, tag = 'scoped memory for tpu_custom_call.1']
    #allocation7 [shape = 'u8[4096]{0}', space=vmem, size = 0x1000, scoped, tag = 'output window, operand 0, single buffered']
    %11 = vsyncpa [#allocation3], 0
    %12 = vsyncpa [#allocation6], 0
    %13 = vsyncpa [#allocation4], 0
    // Predicated region
    $region2: #{tpu_custom_call.1} parent=1 // pred_check
      _
    $region3: #{tpu_custom_call.1} parent=1 // pred_check_branch
      %15 = sbr.rel (0) target = $region5
    $region4: #{tpu_custom_call.1} parent=1 // pred_region
      %17 = vsyncadd [#allocation3], 0
      %s19 = sshll.u32 %s0, 4
      %s20 = int_to_ptr.hbm [resolvable:$true] %s19
      %s21 = sshll.u32 [#allocation2], 4
      %s22 = int_to_ptr.vmem [resolvable:$true] %s21
      %24 = dma.hbm_to_vmem [thread:$0]  %s20, 128, %s22, [#allocation3]
    $region5: #{tpu_custom_call.1} parent=1 // pred_fallthru
      _
    // Predicated region
    $region6: #{tpu_custom_call.1} parent=1 // pred_check
      _
    $region7: #{tpu_custom_call.1} parent=1 // pred_check_branch
      %26 = sbr.rel (0) target = $region9
    $region8: #{tpu_custom_call.1} parent=1 // pred_region
      %28 = vsyncadd [#allocation6], 0
      %s29 = sshll.u32 %s1, 4
      %s30 = int_to_ptr.hbm [resolvable:$true] %s29
      %s31 = sshll.u32 [#allocation5], 4
      %s32 = int_to_ptr.vmem [resolvable:$true] %s31
      %37 = dma.hbm_to_vmem [thread:$0]  %s30, 4096, %s32, [#allocation6], 256, 256, 16
    $region9: #{tpu_custom_call.1} parent=1 // pred_fallthru
      _
    // Predicated region
    $region10: #{tpu_custom_call.1} parent=1 // pred_check
      _
    $region11: #{tpu_custom_call.1} parent=1 // pred_check_branch
      %39 = sbr.rel (0) target = $region13
    $region12: #{tpu_custom_call.1} parent=1 // pred_region
      _
    $region13: #{tpu_custom_call.1} parent=1 // pred_fallthru
      _
    // Predicated region
    $region14: #{tpu_custom_call.1} parent=1 // pred_check
      _
    $region15: #{tpu_custom_call.1} parent=1 // pred_check_branch
      %41 = sbr.rel (0) target = $region17
    $region16: #{tpu_custom_call.1} parent=1 // pred_region
      _
    $region17: #{tpu_custom_call.1} parent=1 // pred_fallthru
      _
    // Predicated region
    $region18: #{tpu_custom_call.1} parent=1 // pred_check
      _
    $region19: #{tpu_custom_call.1} parent=1 // pred_check_branch
      %43 = sbr.rel (0) target = $region21
    $region20: #{tpu_custom_call.1} parent=1 // pred_region
      _
    $region21: #{tpu_custom_call.1} parent=1 // pred_fallthru
      _
    // Predicated region
    $region22: #{tpu_custom_call.1} parent=1 // pred_check
      _
    $region23: #{tpu_custom_call.1} parent=1 // pred_check_branch
      %45 = sbr.rel (0) target = $region25
    $region24: #{tpu_custom_call.1} parent=1 // pred_region
      _
    $region25: #{tpu_custom_call.1} parent=1 // pred_fallthru
      _
    // Predicated region
    $region26: #{tpu_custom_call.1} parent=1 // pred_check
      _
    $region27: #{tpu_custom_call.1} parent=1 // pred_check_branch
      %47 = sbr.rel (0) target = $region29
    $region28: #{tpu_custom_call.1} parent=1 // pred_region
      %49 = dma.done [#allocation3], 128
    $region29: #{tpu_custom_call.1} parent=1 // pred_fallthru
      _
    // Predicated region
    $region30: #{tpu_custom_call.1} parent=1 // pred_check
      _
    $region31: #{tpu_custom_call.1} parent=1 // pred_check_branch
      %51 = sbr.rel (0) target = $region33
    $region32: #{tpu_custom_call.1} parent=1 // pred_region
      %53 = dma.done [#allocation6], 4096
    $region33: #{tpu_custom_call.1} parent=1 // pred_fallthru
      _
    %v54 = vld [vmem:[#allocation2] sm:$0xff]
    %v55 = vld [vmem:[#allocation5] sm:$0xff]
    %v56 = vld [vmem:[#allocation5 + $0x8] sm:$0xff]
    %v57 = vld [vmem:[#allocation5 + $0x10] sm:$0xff]
    %v58 = vld [vmem:[#allocation5 + $0x18] sm:$0xff]
    %v59 = vld [vmem:[#allocation5 + $0x20] sm:$0xff]
    %v60 = vld [vmem:[#allocation5 + $0x28] sm:$0xff]
    %v61 = vld [vmem:[#allocation5 + $0x30] sm:$0xff]
    %v62 = vld [vmem:[#allocation5 + $0x38] sm:$0xff]
    %v63 = vld [vmem:[#allocation5 + $0x40] sm:$0xff]
    %v64 = vld [vmem:[#allocation5 + $0x48] sm:$0xff]
    %v65 = vld [vmem:[#allocation5 + $0x50] sm:$0xff]
    %v66 = vld [vmem:[#allocation5 + $0x58] sm:$0xff]
    %v67 = vld [vmem:[#allocation5 + $0x60] sm:$0xff]
    %v68 = vld [vmem:[#allocation5 + $0x68] sm:$0xff]
    %v69 = vld [vmem:[#allocation5 + $0x70] sm:$0xff]
    %v70 = vld [vmem:[#allocation5 + $0x78] sm:$0xff]
    %v71 = vld [vmem:[#allocation5 + $0x80] sm:$0xff]
    %v72 = vld [vmem:[#allocation5 + $0x88] sm:$0xff]
    %v73 = vld [vmem:[#allocation5 + $0x90] sm:$0xff]
    %v74 = vld [vmem:[#allocation5 + $0x98] sm:$0xff]
    %v75 = vld [vmem:[#allocation5 + $0xa0] sm:$0xff]
    %v76 = vld [vmem:[#allocation5 + $0xa8] sm:$0xff]
    %v77 = vld [vmem:[#allocation5 + $0xb0] sm:$0xff]
    %v78 = vld [vmem:[#allocation5 + $0xb8] sm:$0xff]
    %v79 = vld [vmem:[#allocation5 + $0xc0] sm:$0xff]
    %v80 = vld [vmem:[#allocation5 + $0xc8] sm:$0xff]
    %v81 = vld [vmem:[#allocation5 + $0xd0] sm:$0xff]
    %v82 = vld [vmem:[#allocation5 + $0xd8] sm:$0xff]
    %v83 = vld [vmem:[#allocation5 + $0xe0] sm:$0xff]
    %v84 = vld [vmem:[#allocation5 + $0xe8] sm:$0xff]
    %v85 = vld [vmem:[#allocation5 + $0xf0] sm:$0xff]
    %v86 = vld [vmem:[#allocation5 + $0xf8] sm:$0xff]
    %87 = vmatpush.msra.mxu0 %v85
    %88 = vmatpush.msra.mxu0 %v83
    %89 = vmatpush.msra.mxu0 %v81
    %90 = vmatpush.msra.mxu0 %v79
    %91 = vmatpush.msra.mxu0 %v77
    %92 = vmatpush.msra.mxu0 %v75
    %93 = vmatpush.msra.mxu0 %v73
    %94 = vmatpush.msra.mxu0 %v71
    %95 = vmatpush.msra.mxu0 %v69
    %96 = vmatpush.msra.mxu0 %v67
    %97 = vmatpush.msra.mxu0 %v65
    %98 = vmatpush.msra.mxu0 %v63
    %99 = vmatpush.msra.mxu0 %v61
    %100 = vmatpush.msra.mxu0 %v59
    %101 = vmatpush.msra.mxu0 %v57
    %102 = vmatpush.msra.mxu0 %v55
    %103 = vmatmul.f32.gmra.mxu0 %v54
    %v104 = vpop.f32.mrf.mxu0
    %v105 = vadd.f32 0.0, %v104
    %106 = vdwg.mxu0
    %107 = vmatpush.msra.mxu0 %v86
    %108 = vmatpush.msra.mxu0 %v84
    %109 = vmatpush.msra.mxu0 %v82
    %110 = vmatpush.msra.mxu0 %v80
    %111 = vmatpush.msra.mxu0 %v78
    %112 = vmatpush.msra.mxu0 %v76
    %113 = vmatpush.msra.mxu0 %v74
    %114 = vmatpush.msra.mxu0 %v72
    %115 = vmatpush.msra.mxu0 %v70
    %116 = vmatpush.msra.mxu0 %v68
    %117 = vmatpush.msra.mxu0 %v66
    %118 = vmatpush.msra.mxu0 %v64
    %119 = vmatpush.msra.mxu0 %v62
    %120 = vmatpush.msra.mxu0 %v60
    %121 = vmatpush.msra.mxu0 %v58
    %122 = vmatpush.msra.mxu0 %v56
    %123 = vmatmul.f32.gmra.mxu0 %v54
    %v124 = vpop.f32.mrf.mxu0
    %v125 = vadd.f32 0.0, %v124
    %126 = vdwg.mxu0
    %v127 = vld [vmem:[%s2] sm:$0x1]
    %v129 = vperm.slane %v127, 0
    %v131 = vadd.f32 %v105, %v129
    %132 = vadd.xlane.f32.xlu0 %v131
    %v133 = vpop.xlane.xlu0 %132
    %v134 = vrcp.pop 128.0
    %v135 = vmul.f32 128.0, %v134
    %v136 = vsub.f32 1.0, %v135
    %v137 = vmul.f32 %v134, %v136
    %v138 = vadd.f32 %v134, %v137
    %vm139 = vweird.f32 %v134
    %v140 = vsel %vm139, %v134, %v138
    %v141 = vmul.f32 %v133, %v140
    %v142 = vmul.f32 %v131, %v131
    %143 = vadd.xlane.f32.xlu0 %v142
    %v144 = vpop.xlane.xlu0 %143
    %v145 = vmul.f32 %v144, %v140
    %v146 = vmul.f32 %v141, %v141
    %v147 = vsub.f32 %v145, %v146
    %v148 = vmax.f32 %v147, 0.0
    %v149 = vadd.f32 %v148, 1e-05
    %v150 = vrsqrt.pop %v149
    %v151 = vmul.f32 %v150, %v149
    %v152 = vmul.f32 %v151, %v150
    %v153 = vmul.f32 0.5, %v152
    %v154 = vsub.f32 1.5, %v153
    %v155 = vmul.f32 %v150, %v154
    %vm156 = vweird.f32 %v149
    %vm157 = vweird.f32 %v150
    %vm158 = vmor %vm156, %vm157
    %v159 = vsel %vm158, %v150, %v155
    %v160 = vld [vmem:[%s3] sm:$0x1]
    %v162 = vperm.slane %v160, 0
    %v164 = vadd.f32 %v125, %v162
    %v165 = vld [vmem:[%s4] sm:$0x1]
    %v167 = vperm.slane %v165, 0
    %v169 = vmul.f32 %v141, %v167
    %v170 = vsub.f32 %v164, %v169
    %v171 = vmul.f32 %v159, %v170
    %v172 = vld [vmem:[%s5] sm:$0x1]
    %v174 = vperm.slane %v172, 0
    %v176 = vadd.f32 %v171, %v174
    %v177 = vmax.f32 %v176, 0.0
    %178 = vrot.lane.b32.xlu0 %v177, 64
    %v179 = vpop.permute.xlu0 %178
    %v180 = vsub.f32 %v177, %v179
    %v181 = vxor.u32 %v180, 2147483648
    %v182 = vmul.f32 %v181, 1.442695
    %v183 = vpow.pop %v182
    %v184 = vadd.f32 %v183, 1.0
    %v185 = vrcp.pop %v184
    %v186 = vmul.f32 %v184, %v185
    %v187 = vsub.f32 1.0, %v186
    %v188 = vmul.f32 %v185, %v187
    %v189 = vadd.f32 %v185, %v188
    %vm190 = vweird.f32 %v184
    %vm191 = vweird.f32 %v185
    %vm192 = vmor %vm190, %vm191
    %v193 = vsel %vm192, %v185, %v189
    %v194 = vand.u32 2147483647, %v184
    %vm195 = vcmp.eq.f32.partialorder %v194, 8.507059e+37
    %v196 = vand.u32 %v184, 2147483648
    %v197 = vor.u32 1.1754944e-38, %v196
    %v198 = vsel %vm195, %v197, %v193
    %v199 = vmul.f32 1.0, %v198
    %vm200 = vcmask 523264
    %201 = vst.msk [vmem:[#allocation7] sm:$0xff] %vm200, %v199
    // Predicated region
    $region34: #{tpu_custom_call.1} parent=1 // pred_check
      _
    $region35: #{tpu_custom_call.1} parent=1 // pred_check_branch
      %203 = sbr.rel (0) target = $region37
    $region36: #{tpu_custom_call.1} parent=1 // pred_region
      %205 = vsyncadd [#allocation4], 0
      %s207 = sshll.u32 [#allocation7], 4
      %s208 = int_to_ptr.vmem [resolvable:$true] %s207
      %s209 = sshll.u32 %s6, 4
      %s210 = int_to_ptr.hbm [resolvable:$true] %s209
      %212 = dma.vmem_to_hbm [thread:$0]  %s208, 128, %s210, [#allocation4]
    $region37: #{tpu_custom_call.1} parent=1 // pred_fallthru
      _
    // Predicated region
    $region38: #{tpu_custom_call.1} parent=1 // pred_check
      _
    $region39: #{tpu_custom_call.1} parent=1 // pred_check_branch
      %214 = sbr.rel (0) target = $region41
    $region40: #{tpu_custom_call.1} parent=1 // pred_region
      %216 = dma.done [#allocation4], 128
    $region41: #{tpu_custom_call.1} parent=1 // pred_fallthru
      _
    %217 = vsyncpa [#allocation3], 1
    %218 = vsyncpa [#allocation6], 1
    %219 = vsyncpa [#allocation4], 1

</llo_original>
